<compile_context>
chip_gen: v7x
topology: tpu7x:2x2x1
jax: 0.10.0
libtpu: 0.0.40
codegen_flags: <defaults>
</compile_context>

<pallas_src>
import functools

import jax
import jax.numpy as jnp
from jax.experimental import pallas as pl
from jax.experimental.pallas import tpu as pltpu


def _round_up(v, m):
    return (v + m - 1) // m * m


# ---------------------------------------------------------------------------
# Prologue: one-shot fake-quantization of the weight, emitted transposed
# (K, N) in bf16 so the matmul kernel contracts (M,K) x (K,N) directly.
# ---------------------------------------------------------------------------
def _quantize_weight_kernel(scales_ref, w_ref, wq_ref, *, qmin, qmax):
    """scales_ref: SMEM (2,) f32 -> [scale, zero_point]
    w_ref  : VMEM (tn, tk) f32  tile of W     (out_features major)
    wq_ref : VMEM (tk, tn) bf16 tile of W_q^T (in_features major)
    """
    scale = scales_ref[0]
    zp = scales_ref[1]
    w = w_ref[...].astype(jnp.float32)
    # Matches the PyTorch reference exactly: round(w / scale + zp), clamp, dequant.
    q = jnp.clip(jnp.round(w / scale + zp), float(qmin), float(qmax))
    w_q = (q - zp) * scale
    wq_ref[...] = w_q.T.astype(jnp.bfloat16)


# ---------------------------------------------------------------------------
# Main matmul: bf16 x bf16 -> f32 accumulate, bias folded into the init.
# ---------------------------------------------------------------------------
def _matmul_kernel(x_ref, wq_ref, b_ref, o_ref, acc_ref):
    """x_ref   : VMEM (tm, tk) bf16
    wq_ref  : VMEM (tk, tn) bf16   (already fake-quantized + dequantized)
    b_ref   : VMEM (1, tn)  f32
    o_ref   : VMEM (tm, tn)
    acc_ref : VMEM (tm, tn) f32 K-reduction accumulator
    """
    k = pl.program_id(2)

    @pl.when(k == 0)
    def _():
        # Fold bias into the accumulator init (no separate epilogue add).
        acc_ref[...] = jnp.broadcast_to(b_ref[...], acc_ref.shape)

    acc_ref[...] += jnp.dot(x_ref[...], wq_ref[...],
                            preferred_element_type=jnp.float32)

    @pl.when(k == pl.num_programs(2) - 1)
    def _():
        o_ref[...] = acc_ref[...].astype(o_ref.dtype)


def linear_lsq(x, weight, bias, nbits_w, *, tm=256, tn=256, tk=2048):
    """Forward pass of LinearLSQ: fake-quantize(weight) then Linear(x)."""
    out_features, in_features = weight.shape
    assert x.shape[-1] == in_features

    # ---- scalar glue (matches LinearLSQ.quantize scale / zero_point) ----
    # TODO(synk): cache this (one full HBM pass over W) for static weights.
    qmin = -(2 ** (nbits_w - 1))
    qmax = 2 ** (nbits_w - 1) - 1
    w_min = jnp.min(weight)
    w_max = jnp.max(weight)
    scale = jnp.maximum((w_max - w_min) / (qmax - qmin), 1e-08)
    zero_point = qmin - w_min / scale
    scales = jnp.stack([scale, zero_point]).astype(jnp.float32)

    lead_shape = x.shape[:-1]
    x2 = x.reshape(-1, in_features)
    M, K, N = x2.shape[0], in_features, out_features

    # Tile sizes, clamped to the (padded) problem and kept (8,128)-aligned.
    tm_eff = min(tm, _round_up(M, 8))
    tn_eff = min(tn, _round_up(N, 128))
    tk_eff = min(tk, _round_up(K, 128))

    # v7x shards the "parallel" grid axes over 2 TensorCores: if the parallel
    # grid collapses to a single tile, split N (preferred) or M in two.
    if (_round_up(M, tm_eff) // tm_eff) * (_round_up(N, tn_eff) // tn_eff) < 2:
        n128 = _round_up(N, 128) // 128
        m8 = _round_up(M, 8) // 8
        if n128 >= 2:
            tn_eff = min(tn_eff, (n128 // 2) * 128)
        elif m8 >= 2:
            tm_eff = min(tm_eff, ((m8 + 1) // 2) * 8)

    Mp = _round_up(M, tm_eff)
    Np = _round_up(N, tn_eff)
    Kp = _round_up(K, tk_eff)

    # Zero-pad. NOTE (invariant): K-padding is only safe because x's padded
    # columns are zero -- fake-quant of a padded-zero weight is
    # (round(zp) - zp) * scale != 0, but it multiplies a zero x column and so
    # contributes nothing. Padded N columns are sliced away below.
    if (Mp, Kp) != (M, K):
        x2 = jnp.pad(x2, ((0, Mp - M), (0, Kp - K)))
    # Pre-cast activations to bf16 once (re-used for every N tile).
    x2 = x2.astype(jnp.bfloat16)
    w_p = weight
    if (Np, Kp) != (N, K):
        w_p = jnp.pad(weight, ((0, Np - N), (0, Kp - K)))
    b_p = bias if Np == N else jnp.pad(bias, (0, Np - N))
    bias2 = b_p.reshape(1, Np).astype(jnp.float32)

    # ---- prologue: W (Np,Kp) f32 -> W_q^T (Kp,Np) bf16, one pass over W ----
    wq_t = pl.pallas_call(
        functools.partial(_quantize_weight_kernel, qmin=qmin, qmax=qmax),
        out_shape=jax.ShapeDtypeStruct((Kp, Np), jnp.bfloat16),
        grid_spec=pltpu.PrefetchScalarGridSpec(
            num_scalar_prefetch=0,
            grid=(Np // tn_eff, Kp // tk_eff),
            in_specs=[
                pl.BlockSpec(memory_space=pltpu.SMEM),                   # scales
                pl.BlockSpec((tn_eff, tk_eff), lambda j, k: (j, k)),     # W
            ],
            out_specs=pl.BlockSpec((tk_eff, tn_eff), lambda j, k: (k, j)),
        ),
        compiler_params=pltpu.CompilerParams(
            dimension_semantics=("parallel", "parallel")),
    )(scales, w_p)

    # ---- main matmul: (Mp,Kp) bf16 x (Kp,Np) bf16 -> (Mp,Np) out dtype ----
    out = pl.pallas_call(
        _matmul_kernel,
        out_shape=jax.ShapeDtypeStruct((Mp, Np), x.dtype),
        grid_spec=pltpu.PrefetchScalarGridSpec(
            num_scalar_prefetch=0,
            grid=(Mp // tm_eff, Np // tn_eff, Kp // tk_eff),
            in_specs=[
                pl.BlockSpec((tm_eff, tk_eff), lambda i, j, k: (i, k)),  # x
                pl.BlockSpec((tk_eff, tn_eff), lambda i, j, k: (k, j)),  # W_q^T
                pl.BlockSpec((1, tn_eff), lambda i, j, k: (0, j)),       # bias
            ],
            out_specs=pl.BlockSpec((tm_eff, tn_eff), lambda i, j, k: (i, j)),
            scratch_shapes=[pltpu.VMEM((tm_eff, tn_eff), jnp.float32)],
        ),
        compiler_params=pltpu.CompilerParams(
            dimension_semantics=("parallel", "parallel", "arbitrary")),
    )(x2, wq_t, bias2)

    out = out[:M, :N]
    return out.reshape(lead_shape + (N,))


def _reference(x, weight, bias, nbits_w):
    qmin = -(2 ** (nbits_w - 1))
    qmax = 2 ** (nbits_w - 1) - 1
    w_min, w_max = jnp.min(weight), jnp.max(weight)
    scale = jnp.maximum((w_max - w_min) / (qmax - qmin), 1e-08)
    zp = qmin - w_min / scale
    q = jnp.clip(jnp.round(weight / scale + zp), qmin, qmax)
    w_q = (q - zp) * scale
    return jnp.einsum("bsk,nk->bsn", x, w_q) + bias


if __name__ == "__main__":
    # Small OPT-like shapes: batch=2, seq=8, hidden(in)=128, out=256.
    batch, seq, in_features, out_features = 2, 8, 128, 256
    nbits_w = 4

    key = jax.random.PRNGKey(0)
    kx, kw, kb = jax.random.split(key, 3)
    x = jax.random.normal(kx, (batch, seq, in_features), dtype=jnp.float32)
    weight = jax.random.normal(kw, (out_features, in_features),
                               dtype=jnp.float32) * 0.05
    bias = jax.random.normal(kb, (out_features,), dtype=jnp.float32) * 0.01

    y = linear_lsq(x, weight, bias, nbits_w)
    y = jax.block_until_ready(y)

    y_ref = _reference(x, weight, bias, nbits_w)
    assert y.shape == (batch, seq, out_features)
    # bf16 MXU operands + 4-bit fake-quant weights: modest tolerance.
    assert jnp.allclose(y, y_ref, rtol=2e-2, atol=2e-2), "mismatch vs reference"

    print("KERNEL_OK")
</pallas_src>

<mosaic_0001>
module attributes {stable_mosaic.version = 11 : i64} {
  func.func @_quantize_weight_kernel(%arg0: i32, %arg1: i32, %arg2: memref<2xf32, #tpu.memory_space<smem>>, %arg3: memref<128x128xf32, #tpu.memory_space<vmem>>, %arg4: memref<128x128xbf16, #tpu.memory_space<vmem>>) attributes {dimension_semantics = [#tpu.dimension_semantics<parallel>, #tpu.dimension_semantics<parallel>], iteration_bounds = array<i64: 2, 1>, scalar_prefetch = 0 : i64, scratch_operands = 0 : i64, tpu.core_type = #tpu.core_type<tc>, window_params = [{transform_indices = @transform_0, window_bounds = array<i64: 2>}, {transform_indices = @transform_1, window_bounds = array<i64: 128, 128>}, {transform_indices = @transform_2, window_bounds = array<i64: 128, 128>}]} {
    %c0 = arith.constant 0 : index
    %0 = memref.load %arg2[%c0] : memref<2xf32, #tpu.memory_space<smem>>
    %c1 = arith.constant 1 : index
    %1 = memref.load %arg2[%c1] : memref<2xf32, #tpu.memory_space<smem>>
    %c0_0 = arith.constant 0 : index
    %c0_1 = arith.constant 0 : index
    %2 = vector.load %arg3[%c0_0, %c0_1] : memref<128x128xf32, #tpu.memory_space<vmem>>, vector<128x128xf32>
    %3 = vector.broadcast %0 : f32 to vector<128x128xf32>
    %4 = arith.divf %2, %3 : vector<128x128xf32>
    %5 = vector.broadcast %1 : f32 to vector<128x128xf32>
    %6 = arith.addf %4, %5 : vector<128x128xf32>
    %7 = math.roundeven %6 : vector<128x128xf32>
    %cst = arith.constant -8.000000e+00 : f32
    %cst_2 = arith.constant 7.000000e+00 : f32
    %8 = vector.broadcast %cst : f32 to vector<128x128xf32>
    %9 = arith.maximumf %8, %7 : vector<128x128xf32>
    %10 = vector.broadcast %cst_2 : f32 to vector<128x128xf32>
    %11 = arith.minimumf %10, %9 : vector<128x128xf32>
    %12 = vector.broadcast %1 : f32 to vector<128x128xf32>
    %13 = arith.subf %11, %12 : vector<128x128xf32>
    %14 = vector.broadcast %0 : f32 to vector<128x128xf32>
    %15 = arith.mulf %13, %14 : vector<128x128xf32>
    %16 = tpu.transpose %15, [1, 0] : vector<128x128xf32> -> vector<128x128xf32>
    %17 = arith.truncf %16 : vector<128x128xf32> to vector<128x128xbf16>
    %c0_3 = arith.constant 0 : index
    %c0_4 = arith.constant 0 : index
    %18 = vector.load %arg4[%c0_3, %c0_4] : memref<128x128xbf16, #tpu.memory_space<vmem>>, vector<128x128xbf16>
    tpu.vector_store %arg4[%c0_3, %c0_4], %17 {strides = array<i32>} : memref<128x128xbf16, #tpu.memory_space<vmem>>, vector<128x128xbf16>,
    return
  }
  func.func @transform_0(%arg0: i32, %arg1: i32) -> i32 {
    %c0_i32 = arith.constant 0 : i32
    %c0_i32_0 = arith.constant 0 : i32
    return %c0_i32 : i32
  }
  func.func @transform_1(%arg0: i32, %arg1: i32) -> (i32, i32) {
    %c0_i32 = arith.constant 0 : i32
    return %arg0, %arg1 : i32, i32
  }
  func.func @transform_2(%arg0: i32, %arg1: i32) -> (i32, i32) {
    %c0_i32 = arith.constant 0 : i32
    return %arg1, %arg0 : i32, i32
  }
}

</mosaic_0001>

<llo_original>
// kernel: tpu_custom_call.1
$region0: #{tpu_custom_call.1}
  #allocation0 [shape = 'u32[]', space=smem, size = 0x4, offset = 0x4, fixed_abs, tag = 'smem constant byte address 0x4 - core index']
  #allocation1 [shape = 'u32[144,128]{1,0:T(1,128)}', space=vmem, size = 0x12000, scoped, tag = 'internal scratch']
  %s0 = inlined_call_operand.hbm [shape: f32[2], index: 0, kind: input, shape index: {}]
  %s1 = inlined_call_operand.hbm [shape: f32[256,128], index: 1, kind: input, shape index: {}]
  %s2 = inlined_call_operand.hbm [shape: bf16[128,256], index: 2, kind: output, shape index: {}]
  %s3 = sld [smem:[#allocation0]]
  $region49: #{tpu_custom_call.1} parent=0
    _
  %s5 = ssub.s32 1, %s3
  %s6 = scalar_select 0, %s5, %s3
  $region1: #{tpu_custom_call.1} parent=0
    #allocation2 [shape = 'u8[512]{0}', space=smem, size = 0x200, scoped, tag = 'input window, operand 0, single buffered']
    #allocation3 [shape = 's32[2]{0}', space=sflag, size = 0x8, scoped, tag = 'scoped memory for tpu_custom_call.1']
    #allocation4 [shape = 's32[2]{0}', space=sflag, size = 0x8, scoped, tag = 'scoped memory for tpu_custom_call.1']
    #allocation5 [shape = 's32[2]{0}', space=sflag, size = 0x8, scoped, tag = 'scoped memory for tpu_custom_call.1']
    #allocation6 [shape = 'u8[131072]{0}', space=vmem, size = 0x20000, scoped, tag = 'input window, operand 1']
    #allocation7 [shape = 'u8[65536]{0}', space=vmem, size = 0x10000, scoped, tag = 'output window, operand 0']
    %7 = vsyncpa [#allocation5], 0
    %8 = vsyncpa [#allocation3], 0
    %s9 = scalar_lea.sflag [#allocation3], 1
    %10 = vsyncpa %s9, 0
    %11 = vsyncpa [#allocation4], 0
    %s12 = scalar_lea.sflag [#allocation4], 1
    %13 = vsyncpa %s12, 0
    loop: start=0, step=1, limit=4
    $region2: #{tpu_custom_call.1} parent=1 // loop_pre_header
      _
    $region3: #{tpu_custom_call.1} parent=1 // loop_header
      %s15 = sphi 0, %s19
      %p16 = scmp.ge.s32.totalorder %s15, 4
      %s22 = sphi 0, %s34
      %s23 = sphi 0, %s30
      %s24 = sphi 0, %s22
      %s25 = sphi 0, %s23
      %s26 = sphi 0, %s24
      %s27 = sphi 0, %s25
      %s35 = sphi 0, %s35
      %s37 = sphi 0, %s35
      %s38 = sphi 0, %s37
      %s52 = sphi 0, %s38
      %s60 = sphi 0, %s62
      %s63 = sphi 0, %s60
      %s64 = sphi 0, %s63
      %s80 = sphi 0, %s64
      %s88 = sphi 0, %s90
      %s91 = sphi 0, %s88
      %s92 = sphi 0, %s91
      %s108 = sphi 0, %s92
    $region4: #{tpu_custom_call.1} parent=1 // loop_header_branch
      %18 = sbr.rel (%p16) target = $region8
    $region5: #{tpu_custom_call.1} parent=1 // loop_body
      %s20 = ssub.s32 %s15, 1
      %s21 = ssub.s32 %s15, 2
      %s28 = sadd.s32 1, %s23
      %p29 = scmp.ge.s32.totalorder %s28, 1
      %s30 = scalar_select %p29, 0, %s28
      %s31 = sadd.s32 1, %s22
      %s32 = scalar_select %p29, %s31, %s22
      %p33 = scmp.ge.s32.totalorder %s32, 2
      %s34 = scalar_select %p33, 0, %s32
      %s36 = sadd.s32 %s35, 1
      %p39 = scmp.eq.s32.totalorder %s15, 1
      %p40 = scmp.ne.s32.totalorder %s35, %s37
      %p41 = scmp.eq.s32.totalorder %s15, 0
      %p42 = por %p40, %p41
      %p43 = scmp.ne.s32.totalorder %s35, %s37
      %p44 = scmp.eq.s32.totalorder %s20, 1
      %p45 = por %p43, %p44
      %p46 = scmp.ne.s32.totalorder %s37, %s38
      %p47 = scmp.eq.s32.totalorder %s20, 0
      %p48 = por %p46, %p47
      %p49 = scmp.ne.s32.totalorder %s37, %s38
      %p50 = scmp.eq.s32.totalorder %s21, 1
      %p51 = por %p49, %p50
      %p53 = scmp.ne.s32.totalorder %s38, %s52
      %p54 = scmp.eq.s32.totalorder %s21, 0
      %p55 = por %p53, %p54
      %s56 = ssub.s32 %s22, %s34
      %s57 = ssub.s32 %s23, %s30
      %s58 = sor.u32 %s56, %s57
      %p59 = scmp.eq.s32.totalorder %s58, 0
      %s61 = sadd.s32 %s60, 1
      %s62 = scalar_select %p59, %s60, %s61
      %p65 = pneg %p59
      %p66 = scmp.eq.s32.totalorder %s15, 1
      %p67 = por %p65, %p66
      %p68 = scmp.ne.s32.totalorder %s60, %s63
      %p69 = scmp.eq.s32.totalorder %s15, 0
      %p70 = por %p68, %p69
      %p71 = scmp.ne.s32.totalorder %s60, %s63
      %p72 = scmp.eq.s32.totalorder %s20, 1
      %p73 = por %p71, %p72
      %p74 = scmp.ne.s32.totalorder %s63, %s64
      %p75 = scmp.eq.s32.totalorder %s20, 0
      %p76 = por %p74, %p75
      %p77 = scmp.ne.s32.totalorder %s63, %s64
      %p78 = scmp.eq.s32.totalorder %s21, 1
      %p79 = por %p77, %p78
      %p81 = scmp.ne.s32.totalorder %s64, %s80
      %p82 = scmp.eq.s32.totalorder %s21, 0
      %p83 = por %p81, %p82
      %s84 = ssub.s32 %s23, %s30
      %s85 = ssub.s32 %s22, %s34
      %s86 = sor.u32 %s84, %s85
      %p87 = scmp.eq.s32.totalorder %s86, 0
      %s89 = sadd.s32 %s88, 1
      %s90 = scalar_select %p87, %s88, %s89
      %p93 = pneg %p87
      %p94 = scmp.eq.s32.totalorder %s15, 1
      %p95 = por %p93, %p94
      %p96 = scmp.ne.s32.totalorder %s88, %s91
      %p97 = scmp.eq.s32.totalorder %s15, 0
      %p98 = por %p96, %p97
      %p99 = scmp.ne.s32.totalorder %s88, %s91
      %p100 = scmp.eq.s32.totalorder %s20, 1
      %p101 = por %p99, %p100
      %p102 = scmp.ne.s32.totalorder %s91, %s92
      %p103 = scmp.eq.s32.totalorder %s20, 0
      %p104 = por %p102, %p103
      %p105 = scmp.ne.s32.totalorder %s91, %s92
      %p106 = scmp.eq.s32.totalorder %s21, 1
      %p107 = por %p105, %p106
      %p109 = scmp.ne.s32.totalorder %s92, %s108
      %p110 = scmp.eq.s32.totalorder %s21, 0
      %p111 = por %p109, %p110
      %p112 = scmp.le.s32.totalorder 1, %s15
      %p113 = scmp.lt.s32.totalorder %s15, 3
      %p114 = pnand %p112, %p113
      %p115 = pneg %p114
      // Predicated region
      $region9: #{tpu_custom_call.1} parent=5 // pred_check
        _
      $region10: #{tpu_custom_call.1} parent=5 // pred_check_branch
        %117 = sbr.rel (%p114) target = $region12
      $region11: #{tpu_custom_call.1} parent=5 // pred_region
        %s118 = ssub.s32 %s15, 1
        // Predicated region
        $region13: #{tpu_custom_call.1} parent=11 // pred_check
          %p119 = pneg %p48
        $region14: #{tpu_custom_call.1} parent=11 // pred_check_branch
          %121 = sbr.rel (%p119) target = $region16
        $region15: #{tpu_custom_call.1} parent=11 // pred_region
          %s123 = ssub.s32 16, 16
          %124 = vsyncadd [#allocation5], %s123
          %127 = dma.hbm_to_smem %s0, 16, [#allocation2], [#allocation5]
        $region16: #{tpu_custom_call.1} parent=11 // pred_fallthru
          _
      $region12: #{tpu_custom_call.1} parent=5 // pred_fallthru
        _
      %p128 = scmp.lt.s32.totalorder %s15, 2
      // Predicated region
      $region17: #{tpu_custom_call.1} parent=5 // pred_check
        %p129 = pneg %p128
      $region18: #{tpu_custom_call.1} parent=5 // pred_check_branch
        %131 = sbr.rel (%p129) target = $region20
      $region19: #{tpu_custom_call.1} parent=5 // pred_region
        // Predicated region
        $region21: #{tpu_custom_call.1} parent=19 // pred_check
          %p132 = pneg %p70
        $region22: #{tpu_custom_call.1} parent=19 // pred_check_branch
          %134 = sbr.rel (%p132) target = $region24
        $region23: #{tpu_custom_call.1} parent=19 // pred_region
          %s135 = sand.u32 %s60, 1
          %s136 = scalar_lea.sflag [#allocation3], %s135
          %s137 = sand.u32 %s60, 1
          %s138 = smul.addr %s137, 128
          %s139 = scalar_lea.vmem [#allocation6], %s138
          %s140 = smul.u32 16, %s22
          %s142 = ssub.s32 2048, 2048
          %143 = vsyncadd %s136, %s142
          %s144 = sadd.s32 %s23, %s140
          %s145 = smul.addr %s144, 128
          %s146 = scalar_lea.hbm %s1, %s145
          %s147 = sshll.u32 %s139, 4
          %s148 = int_to_ptr.vmem [resolvable:$true] %s147
          %153 = dma.hbm_to_vmem [thread:$0]  %s146, 2048, %s148, %s136, 128, 128, 8
        $region24: #{tpu_custom_call.1} parent=19 // pred_fallthru
          _
      $region20: #{tpu_custom_call.1} parent=5 // pred_fallthru
        _
      %p154 = scmp.le.s32.totalorder 1, %s15
      %p155 = scmp.lt.s32.totalorder %s15, 3
      %p156 = pnand %p154, %p155
      %p157 = pneg %p156
      // Predicated region
      $region25: #{tpu_custom_call.1} parent=5 // pred_check
        _
      $region26: #{tpu_custom_call.1} parent=5 // pred_check_branch
        %159 = sbr.rel (%p156) target = $region28
      $region27: #{tpu_custom_call.1} parent=5 // pred_region
        %s160 = ssub.s32 %s15, 1
        // Predicated region
        $region29: #{tpu_custom_call.1} parent=27 // pred_check
          %p161 = pneg %p48
        $region30: #{tpu_custom_call.1} parent=27 // pred_check_branch
          %163 = sbr.rel (%p161) target = $region32
        $region31: #{tpu_custom_call.1} parent=27 // pred_region
          %164 = dma.done [#allocation5], 16
        $region32: #{tpu_custom_call.1} parent=27 // pred_fallthru
          _
        %s165 = sand.u32 %s63, 1
        %s166 = scalar_lea.sflag [#allocation3], %s165
        %s167 = sand.u32 %s63, 1
        %s168 = smul.addr %s167, 128
        %s169 = scalar_lea.vmem [#allocation6], %s168
        // Predicated region
        $region33: #{tpu_custom_call.1} parent=27 // pred_check
          %p170 = pneg %p76
        $region34: #{tpu_custom_call.1} parent=27 // pred_check_branch
          %172 = sbr.rel (%p170) target = $region36
        $region35: #{tpu_custom_call.1} parent=27 // pred_region
          %173 = dma.done %s166, 2048
        $region36: #{tpu_custom_call.1} parent=27 // pred_fallthru
          _
        %174 = sfence
        %p175 = pneg %p48
        %p176 = pneg %p45
        %s177 = sand.u32 %s63, 1
        %s178 = scalar_lea.sflag [#allocation3], %s177
        %s179 = sand.u32 %s63, 1
        %s180 = smul.addr %s179, 128
        %s181 = scalar_lea.vmem [#allocation6], %s180
        %p182 = pneg %p76
        %p183 = pneg %p73
        %p184 = pneg %p104
        %p185 = pneg %p101
        %s186 = sand.u32 %s91, 1
        %s187 = scalar_lea.sflag [#allocation4], %s186
        %s188 = sand.u32 %s91, 1
        %s189 = smul.addr %s188, 64
        %s190 = scalar_lea.vmem [#allocation7], %s189
        %s191 = smul.u32 16, %s24
        %s192 = smul.u32 16, %s25
        %s193 = sld [smem:[#allocation2]]
        %s194 = sld [smem:[#allocation2 + $0x1]]
        %v195 = vld [vmem:[%s169] sm:$0xff]
        %v196 = vld [vmem:[%s169 + $0x8] sm:$0xff]
        %v197 = vld [vmem:[%s169 + $0x10] sm:$0xff]
        %v198 = vld [vmem:[%s169 + $0x18] sm:$0xff]
        %v199 = vld [vmem:[%s169 + $0x20] sm:$0xff]
        %v200 = vld [vmem:[%s169 + $0x28] sm:$0xff]
        %v201 = vld [vmem:[%s169 + $0x30] sm:$0xff]
        %v202 = vld [vmem:[%s169 + $0x38] sm:$0xff]
        %v203 = vld [vmem:[%s169 + $0x40] sm:$0xff]
        %v204 = vld [vmem:[%s169 + $0x48] sm:$0xff]
        %v205 = vld [vmem:[%s169 + $0x50] sm:$0xff]
        %v206 = vld [vmem:[%s169 + $0x58] sm:$0xff]
        %v207 = vld [vmem:[%s169 + $0x60] sm:$0xff]
        %v208 = vld [vmem:[%s169 + $0x68] sm:$0xff]
        %v209 = vld [vmem:[%s169 + $0x70] sm:$0xff]
        %v210 = vld [vmem:[%s169 + $0x78] sm:$0xff]
        %v211 = vstv %s193
        %v212 = vrcp.pop %v211
        %v213 = vmul.f32 %v195, %v212
        %v214 = vmul.f32 %v196, %v212
        %v215 = vmul.f32 %v197, %v212
        %v216 = vmul.f32 %v198, %v212
        %v217 = vmul.f32 %v199, %v212
        %v218 = vmul.f32 %v200, %v212
        %v219 = vmul.f32 %v201, %v212
        %v220 = vmul.f32 %v202, %v212
        %v221 = vmul.f32 %v203, %v212
        %v222 = vmul.f32 %v204, %v212
        %v223 = vmul.f32 %v205, %v212
        %v224 = vmul.f32 %v206, %v212
        %v225 = vmul.f32 %v207, %v212
        %v226 = vmul.f32 %v208, %v212
        %v227 = vmul.f32 %v209, %v212
        %v228 = vmul.f32 %v210, %v212
        %v229 = vstv %s194
        %v230 = vadd.f32 %v213, %v229
        %v231 = vadd.f32 %v214, %v229
        %v232 = vadd.f32 %v215, %v229
        %v233 = vadd.f32 %v216, %v229
        %v234 = vadd.f32 %v217, %v229
        %v235 = vadd.f32 %v218, %v229
        %v236 = vadd.f32 %v219, %v229
        %v237 = vadd.f32 %v220, %v229
        %v238 = vadd.f32 %v221, %v229
        %v239 = vadd.f32 %v222, %v229
        %v240 = vadd.f32 %v223, %v229
        %v241 = vadd.f32 %v224, %v229
        %v242 = vadd.f32 %v225, %v229
        %v243 = vadd.f32 %v226, %v229
        %v244 = vadd.f32 %v227, %v229
        %v245 = vadd.f32 %v228, %v229
        %v246 = vround.ne.pseudo %v230
        %v247 = vround.ne.pseudo %v231
        %v248 = vround.ne.pseudo %v232
        %v249 = vround.ne.pseudo %v233
        %v250 = vround.ne.pseudo %v234
        %v251 = vround.ne.pseudo %v235
        %v252 = vround.ne.pseudo %v236
        %v253 = vround.ne.pseudo %v237
        %v254 = vround.ne.pseudo %v238
        %v255 = vround.ne.pseudo %v239
        %v256 = vround.ne.pseudo %v240
        %v257 = vround.ne.pseudo %v241
        %v258 = vround.ne.pseudo %v242
        %v259 = vround.ne.pseudo %v243
        %v260 = vround.ne.pseudo %v244
        %v261 = vround.ne.pseudo %v245
        %v262 = vmax.f32 %v246, -8.0
        %v263 = vmax.f32 %v247, -8.0
        %v264 = vmax.f32 %v248, -8.0
        %v265 = vmax.f32 %v249, -8.0
        %v266 = vmax.f32 %v250, -8.0
        %v267 = vmax.f32 %v251, -8.0
        %v268 = vmax.f32 %v252, -8.0
        %v269 = vmax.f32 %v253, -8.0
        %v270 = vmax.f32 %v254, -8.0
        %v271 = vmax.f32 %v255, -8.0
        %v272 = vmax.f32 %v256, -8.0
        %v273 = vmax.f32 %v257, -8.0
        %v274 = vmax.f32 %v258, -8.0
        %v275 = vmax.f32 %v259, -8.0
        %v276 = vmax.f32 %v260, -8.0
        %v277 = vmax.f32 %v261, -8.0
        %v278 = vmin.f32 %v262, 7.0
        %v279 = vmin.f32 %v263, 7.0
        %v280 = vmin.f32 %v264, 7.0
        %v281 = vmin.f32 %v265, 7.0
        %v282 = vmin.f32 %v266, 7.0
        %v283 = vmin.f32 %v267, 7.0
        %v284 = vmin.f32 %v268, 7.0
        %v285 = vmin.f32 %v269, 7.0
        %v286 = vmin.f32 %v270, 7.0
        %v287 = vmin.f32 %v271, 7.0
        %v288 = vmin.f32 %v272, 7.0
        %v289 = vmin.f32 %v273, 7.0
        %v290 = vmin.f32 %v274, 7.0
        %v291 = vmin.f32 %v275, 7.0
        %v292 = vmin.f32 %v276, 7.0
        %v293 = vmin.f32 %v277, 7.0
        %v294 = vsub.f32 %v278, %v229
        %v295 = vsub.f32 %v279, %v229
        %v296 = vsub.f32 %v280, %v229
        %v297 = vsub.f32 %v281, %v229
        %v298 = vsub.f32 %v282, %v229
        %v299 = vsub.f32 %v283, %v229
        %v300 = vsub.f32 %v284, %v229
        %v301 = vsub.f32 %v285, %v229
        %v302 = vsub.f32 %v286, %v229
        %v303 = vsub.f32 %v287, %v229
        %v304 = vsub.f32 %v288, %v229
        %v305 = vsub.f32 %v289, %v229
        %v306 = vsub.f32 %v290, %v229
        %v307 = vsub.f32 %v291, %v229
        %v308 = vsub.f32 %v292, %v229
        %v309 = vsub.f32 %v293, %v229
        %v310 = vmul.f32 %v294, %v211
        %v311 = vmul.f32 %v295, %v211
        %v312 = vmul.f32 %v296, %v211
        %v313 = vmul.f32 %v297, %v211
        %v314 = vmul.f32 %v298, %v211
        %v315 = vmul.f32 %v299, %v211
        %v316 = vmul.f32 %v300, %v211
        %v317 = vmul.f32 %v301, %v211
        %v318 = vmul.f32 %v302, %v211
        %v319 = vmul.f32 %v303, %v211
        %v320 = vmul.f32 %v304, %v211
        %v321 = vmul.f32 %v305, %v211
        %v322 = vmul.f32 %v306, %v211
        %v323 = vmul.f32 %v307, %v211
        %v324 = vmul.f32 %v308, %v211
        %v325 = vmul.f32 %v309, %v211
        %326 = vxpose.xlu0.b32.start [1/16] %v310, 128
        %327 = vxpose.xlu0.b32.cont [2/16] %v311, 128
        %328 = vxpose.xlu0.b32.cont [3/16] %v312, 128
        %329 = vxpose.xlu0.b32.cont [4/16] %v313, 128
        %330 = vxpose.xlu0.b32.cont [5/16] %v314, 128
        %331 = vxpose.xlu0.b32.cont [6/16] %v315, 128
        %332 = vxpose.xlu0.b32.cont [7/16] %v316, 128
        %333 = vxpose.xlu0.b32.cont [8/16] %v317, 128
        %334 = vxpose.xlu0.b32.cont [9/16] %v318, 128
        %335 = vxpose.xlu0.b32.cont [10/16] %v319, 128
        %336 = vxpose.xlu0.b32.cont [11/16] %v320, 128
        %337 = vxpose.xlu0.b32.cont [12/16] %v321, 128
        %338 = vxpose.xlu0.b32.cont [13/16] %v322, 128
        %339 = vxpose.xlu0.b32.cont [14/16] %v323, 128
        %340 = vxpose.xlu0.b32.cont [15/16] %v324, 128
        %341 = vxpose.xlu0.b32.end [16/16] %v325, 128
        %v342 = vpop.trf.xlu0
        %v343 = vpop.trf.xlu0
        %v344 = vpop.trf.xlu0
        %v345 = vpop.trf.xlu0
        %v346 = vpop.trf.xlu0
        %v347 = vpop.trf.xlu0
        %v348 = vpop.trf.xlu0
        %v349 = vpop.trf.xlu0
        %v350 = vpop.trf.xlu0
        %v351 = vpop.trf.xlu0
        %v352 = vpop.trf.xlu0
        %v353 = vpop.trf.xlu0
        %v354 = vpop.trf.xlu0
        %v355 = vpop.trf.xlu0
        %v356 = vpop.trf.xlu0
        %v357 = vpop.trf.xlu0
        %v358 = vpack.c.bf16 %v343, %v342
        %v359 = vpack.c.bf16 %v345, %v344
        %v360 = vpack.c.bf16 %v347, %v346
        %v361 = vpack.c.bf16 %v349, %v348
        %v362 = vpack.c.bf16 %v351, %v350
        %v363 = vpack.c.bf16 %v353, %v352
        %v364 = vpack.c.bf16 %v355, %v354
        %v365 = vpack.c.bf16 %v357, %v356
        %v374 = vunpack.c.l.b16 %v358
        %v375 = vunpack.c.h.b16 %v358
        %v376 = vunpack.c.l.b16 %v359
        %v377 = vunpack.c.h.b16 %v359
        %v378 = vunpack.c.l.b16 %v360
        %v379 = vunpack.c.h.b16 %v360
        %v380 = vunpack.c.l.b16 %v361
        %v381 = vunpack.c.h.b16 %v361
        %v382 = vunpack.c.l.b16 %v362
        %v383 = vunpack.c.h.b16 %v362
        %v384 = vunpack.c.l.b16 %v363
        %v385 = vunpack.c.h.b16 %v363
        %v386 = vunpack.c.l.b16 %v364
        %v387 = vunpack.c.h.b16 %v364
        %v388 = vunpack.c.l.b16 %v365
        %v389 = vunpack.c.h.b16 %v365
        %v390 = vpack.c.b16 %v374, %v374
        %v391 = vpack.c.b16 %v375, %v375
        %v392 = vpack.c.b16 %v376, %v376
        %v393 = vpack.c.b16 %v377, %v377
        %v394 = vpack.c.b16 %v378, %v378
        %v395 = vpack.c.b16 %v379, %v379
        %v396 = vpack.c.b16 %v380, %v380
        %v397 = vpack.c.b16 %v381, %v381
        %v398 = vpack.c.b16 %v382, %v382
        %v399 = vpack.c.b16 %v383, %v383
        %v400 = vpack.c.b16 %v384, %v384
        %v401 = vpack.c.b16 %v385, %v385
        %v402 = vpack.c.b16 %v386, %v386
        %v403 = vpack.c.b16 %v387, %v387
        %v404 = vpack.c.b16 %v388, %v388
        %v405 = vpack.c.b16 %v389, %v389
        %422 = vst [vmem:[%s190] sm:$0xf] %v390
        %423 = vst [vmem:[%s190 + $0x4] sm:$0xf] %v391
        %424 = vst [vmem:[%s190 + $0x8] sm:$0xf] %v392
        %425 = vst [vmem:[%s190 + $0xc] sm:$0xf] %v393
        %426 = vst [vmem:[%s190 + $0x10] sm:$0xf] %v394
        %427 = vst [vmem:[%s190 + $0x14] sm:$0xf] %v395
        %428 = vst [vmem:[%s190 + $0x18] sm:$0xf] %v396
        %429 = vst [vmem:[%s190 + $0x1c] sm:$0xf] %v397
        %430 = vst [vmem:[%s190 + $0x20] sm:$0xf] %v398
        %431 = vst [vmem:[%s190 + $0x24] sm:$0xf] %v399
        %432 = vst [vmem:[%s190 + $0x28] sm:$0xf] %v400
        %433 = vst [vmem:[%s190 + $0x2c] sm:$0xf] %v401
        %434 = vst [vmem:[%s190 + $0x30] sm:$0xf] %v402
        %435 = vst [vmem:[%s190 + $0x34] sm:$0xf] %v403
        %436 = vst [vmem:[%s190 + $0x38] sm:$0xf] %v404
        %437 = vst [vmem:[%s190 + $0x3c] sm:$0xf] %v405
        %s438 = sand.u32 %s91, 1
        %s439 = scalar_lea.sflag [#allocation4], %s438
        %s440 = sand.u32 %s91, 1
        %s441 = smul.addr %s440, 64
        %s442 = scalar_lea.vmem [#allocation7], %s441
        // Predicated region
        $region37: #{tpu_custom_call.1} parent=27 // pred_check
          %p443 = pneg %p101
        $region38: #{tpu_custom_call.1} parent=27 // pred_check_branch
          %445 = sbr.rel (%p443) target = $region40
        $region39: #{tpu_custom_call.1} parent=27 // pred_region
          %s446 = smul.u32 16, %s25
          %s448 = ssub.s32 1024, 1024
          %449 = vsyncadd %s439, %s448
          %s450 = smul.addr %s446, 2
          %s451 = sadd.s32 %s24, %s450
          %s452 = smul.addr %s451, 64
          %s453 = scalar_lea.hbm %s2, %s452
          %s454 = sshll.u32 %s442, 4
          %s455 = int_to_ptr.vmem [resolvable:$true] %s454
          %460 = dma.vmem_to_hbm [thread:$0]  %s455, 1024, %s453, %s439, 64, 128, 4
        $region40: #{tpu_custom_call.1} parent=27 // pred_fallthru
          _
      $region28: #{tpu_custom_call.1} parent=5 // pred_fallthru
        _
      %p461 = scmp.le.s32.totalorder 2, %s15
      // Predicated region
      $region41: #{tpu_custom_call.1} parent=5 // pred_check
        %p462 = pneg %p461
      $region42: #{tpu_custom_call.1} parent=5 // pred_check_branch
        %464 = sbr.rel (%p462) target = $region44
      $region43: #{tpu_custom_call.1} parent=5 // pred_region
        %s465 = ssub.s32 %s15, 2
        // Predicated region
        $region45: #{tpu_custom_call.1} parent=43 // pred_check
          %p466 = pneg %p107
        $region46: #{tpu_custom_call.1} parent=43 // pred_check_branch
          %468 = sbr.rel (%p466) target = $region48
        $region47: #{tpu_custom_call.1} parent=43 // pred_region
          %s469 = sand.u32 %s92, 1
          %s470 = scalar_lea.sflag [#allocation4], %s469
          %s471 = sand.u32 %s92, 1
          %s472 = smul.addr %s471, 64
          %s473 = scalar_lea.vmem [#allocation7], %s472
          %474 = dma.done %s470, 1024
        $region48: #{tpu_custom_call.1} parent=43 // pred_fallthru
          _
      $region44: #{tpu_custom_call.1} parent=5 // pred_fallthru
        _
    $region6: #{tpu_custom_call.1} parent=1 // loop_footer
      %s19 = sadd.s32 1, %s15
    $region7: #{tpu_custom_call.1} parent=1 // loop_footer_branch
      %14 = sbr.rel target = $region3
    $region8: #{tpu_custom_call.1} parent=1 // loop_exit
      _
    %475 = vsyncpa [#allocation3], 1
    %s476 = scalar_lea.sflag [#allocation3], 1
    %477 = vsyncpa %s476, 1
    %478 = vsyncpa [#allocation4], 1
    %s479 = scalar_lea.sflag [#allocation4], 1
    %480 = vsyncpa %s479, 1
    %481 = vsyncpa [#allocation5], 1
    %s482 = scalar_lea.sflag [#allocation5], 1
    %483 = vsyncpa %s482, 1

</llo_original>
